<compile_context>
chip_gen: v7x
topology: tpu7x:2x2x1
jax: 0.10.0
libtpu: 0.0.40
codegen_flags: <defaults>
</compile_context>

<pallas_src>
import functools

import jax
import jax.numpy as jnp
from jax.experimental import pallas as pl
from jax.experimental.pallas import tpu as pltpu


def _round_up(x, m):
    return (x + m - 1) // m * m


def _conv_bn_relu_kernel(p_ref, w_ref, g_ref, b_ref, o_ref,
                         sum_ref, sqsum_ref, scale_ref, shift_ref,
                         *, inv_rows, eps):
    phase = pl.program_id(0)   # 0 = batch-stats pass, 1 = normalize pass
    tile = pl.program_id(1)    # row tile

    # Conv tile as im2col matmul on the MXU (f32 accumulation). Recomputed in
    # both phases instead of round-tripping the conv output through HBM.
    acc = jnp.dot(p_ref[...], w_ref[...], preferred_element_type=jnp.float32)

    @pl.when((phase == 0) & (tile == 0))
    def _():
        sum_ref[...] = jnp.zeros_like(sum_ref)
        sqsum_ref[...] = jnp.zeros_like(sqsum_ref)

    @pl.when(phase == 0)
    def _():
        sum_ref[...] += jnp.sum(acc, axis=0, keepdims=True)
        sqsum_ref[...] += jnp.sum(acc * acc, axis=0, keepdims=True)

    # Fold gamma/beta + batch stats into per-channel scale/shift exactly once.
    @pl.when((phase == 1) & (tile == 0))
    def _():
        mean = sum_ref[...] * inv_rows                      # divide by TRUE rows
        var = jnp.maximum(sqsum_ref[...] * inv_rows - mean * mean, 0.0)
        s = g_ref[...] * jax.lax.rsqrt(var + eps)           # EUP rsqrt
        scale_ref[...] = s
        shift_ref[...] = b_ref[...] - mean * s

    @pl.when(phase == 1)
    def _():
        y = acc * scale_ref[...] + shift_ref[...]
        o_ref[...] = jnp.maximum(y, 0.0).astype(o_ref.dtype)


def conv_block_forward(x_nchw, w, b, gamma, beta, *, stride=1,
                       tile_rows=256, eps=1e-5, matmul_dtype=jnp.float32):
    """ConvBlock forward.  x_nchw: (N, Cin, H, W); w: (Cout, Cin, K, K).

    matmul_dtype: jnp.bfloat16 halves patch/weight HBM traffic and doubles MXU
    throughput on v6e/v7x (accumulation / BN math stay f32); kept f32 so the
    tight f32 correctness check holds.
    """
    del b  # conv bias cancels exactly under training-mode BatchNorm.
    N, Cin, H, W = x_nchw.shape
    Cout, _, K, _ = w.shape
    pad = K // 2
    Ho = (H + 2 * pad - K) // stride + 1
    Wo = (W + 2 * pad - K) // stride + 1
    rows = N * Ho * Wo
    feat = K * K * Cin

    TM = tile_rows
    rows_p = _round_up(rows, TM)          # pad rows to a multiple of the tile
    Cpad = _round_up(Cout, 128)           # lane-dense output (unmasked stores)

    # ---------- glue: im2col in plain JAX (NHWC internally) ----------
    x_nhwc = jnp.transpose(x_nchw, (0, 2, 3, 1))
    xp = jnp.pad(x_nhwc, ((0, 0), (pad, pad), (pad, pad), (0, 0)))
    cols = []
    for kh in range(K):
        for kw in range(K):
            cols.append(xp[:, kh:kh + stride * Ho:stride,
                            kw:kw + stride * Wo:stride, :])
    patches = jnp.concatenate(cols, axis=-1).reshape(rows, feat)
    patches = jnp.pad(patches, ((0, rows_p - rows), (0, 0))).astype(matmul_dtype)

    # (Cout, Cin, K, K) -> (kh, kw, cin, cout) -> (feat, Cout); zero-pad cout.
    w_mat = jnp.transpose(w, (2, 3, 1, 0)).reshape(feat, Cout)
    w_mat = jnp.pad(w_mat, ((0, 0), (0, Cpad - Cout))).astype(matmul_dtype)

    gamma_p = jnp.pad(gamma.reshape(1, Cout),
                      ((0, 0), (0, Cpad - Cout))).astype(jnp.float32)
    beta_p = jnp.pad(beta.reshape(1, Cout),
                     ((0, 0), (0, Cpad - Cout))).astype(jnp.float32)

    n_tiles = rows_p // TM
    flops = 2 * (2 * rows_p * feat * Cpad)          # matmul runs in both phases
    bytes_acc = (2 * rows_p * feat * patches.dtype.itemsize
                 + feat * Cpad * w_mat.dtype.itemsize
                 + rows_p * Cpad * x_nchw.dtype.itemsize
                 + 4 * Cpad * 4)

    kernel = functools.partial(_conv_bn_relu_kernel,
                               inv_rows=1.0 / rows, eps=eps)

    out2d = pl.pallas_call(
        kernel,
        out_shape=jax.ShapeDtypeStruct((rows_p, Cpad), x_nchw.dtype),
        grid_spec=pltpu.PrefetchScalarGridSpec(
            num_scalar_prefetch=0,
            grid=(2, n_tiles),                      # (phase, row tile)
            in_specs=[
                pl.BlockSpec((TM, feat), lambda p, i: (i, 0)),
                pl.BlockSpec((feat, Cpad), lambda p, i: (0, 0)),   # resident
                pl.BlockSpec((1, Cpad), lambda p, i: (0, 0)),      # gamma
                pl.BlockSpec((1, Cpad), lambda p, i: (0, 0)),      # beta
            ],
            # Phase 0 pins the output block to 0 (never written by the body,
            # never flushed while the index is constant); phase 1 walks the
            # row tiles and stores the final normalized activations.
            out_specs=pl.BlockSpec((TM, Cpad), lambda p, i: (p * i, 0)),
            scratch_shapes=[pltpu.VMEM((1, Cpad), jnp.float32)] * 4,
        ),
        compiler_params=pltpu.CompilerParams(
            # Phase axis orders stats-before-normalize; row axis carries the
            # running stats reduction -> both sequential.
            dimension_semantics=("arbitrary", "arbitrary"),
            vmem_limit_bytes=32 * 1024 * 1024,
        ),
        cost_estimate=pl.CostEstimate(
            flops=flops, transcendentals=Cpad, bytes_accessed=bytes_acc),
    )(patches, w_mat, gamma_p, beta_p)

    out = out2d[:rows, :Cout].reshape(N, Ho, Wo, Cout)
    return jnp.transpose(out, (0, 3, 1, 2))        # back to NCHW


def _reference(x, w, b, gamma, beta, stride=1):
    """Pure-JAX reference matching PyTorch forward (training-mode BN)."""
    pad = w.shape[-1] // 2
    conv = jax.lax.conv_general_dilated(
        x, w, window_strides=(stride, stride),
        padding=((pad, pad), (pad, pad)),
        dimension_numbers=("NCHW", "OIHW", "NCHW"))
    conv = conv + b[None, :, None, None]
    mean = jnp.mean(conv, axis=(0, 2, 3), keepdims=True)
    var = jnp.mean((conv - mean) ** 2, axis=(0, 2, 3), keepdims=True)
    y = (conv - mean) * jax.lax.rsqrt(var + 1e-5)
    y = y * gamma[None, :, None, None] + beta[None, :, None, None]
    return jnp.maximum(y, 0.0)


if __name__ == "__main__":
    key = jax.random.PRNGKey(0)
    k1, k2, k3 = jax.random.split(key, 3)

    N, Cin, H, W = 2, 4, 16, 16
    Cout, K = 8, 3

    x = jax.random.normal(k1, (N, Cin, H, W), jnp.float32)

    # Conv2d params (PyTorch default ~U(-1/sqrt(fan_in), 1/sqrt(fan_in)))
    fan_in = Cin * K * K
    bound = 1.0 / (fan_in ** 0.5)
    w = jax.random.uniform(k2, (Cout, Cin, K, K), jnp.float32, -bound, bound)
    b = jax.random.uniform(k3, (Cout,), jnp.float32, -bound, bound)

    # BatchNorm2d params: PyTorch init weight=1, bias=0
    gamma = jnp.ones((Cout,), jnp.float32)
    beta = jnp.zeros((Cout,), jnp.float32)

    out = conv_block_forward(x, w, b, gamma, beta)
    out = jax.block_until_ready(out)

    ref = _reference(x, w, b, gamma, beta)
    assert out.shape == (N, Cout, H, W)
    assert jnp.allclose(out, ref, rtol=1e-3, atol=1e-3), \
        float(jnp.max(jnp.abs(out - ref)))
    print("KERNEL_OK")
</pallas_src>

<mosaic_0001>
module attributes {stable_mosaic.version = 11 : i64} {
  func.func @_conv_bn_relu_kernel(%arg0: i32, %arg1: i32, %arg2: memref<256x36xf32, #tpu.memory_space<vmem>>, %arg3: memref<36x128xf32, #tpu.memory_space<vmem>>, %arg4: memref<1x128xf32, #tpu.memory_space<vmem>>, %arg5: memref<1x128xf32, #tpu.memory_space<vmem>>, %arg6: memref<256x128xf32, #tpu.memory_space<vmem>>, %arg7: memref<1x128xf32, #tpu.memory_space<vmem>>, %arg8: memref<1x128xf32, #tpu.memory_space<vmem>>, %arg9: memref<1x128xf32, #tpu.memory_space<vmem>>, %arg10: memref<1x128xf32, #tpu.memory_space<vmem>>) attributes {dimension_semantics = [#tpu.dimension_semantics<arbitrary>, #tpu.dimension_semantics<arbitrary>], iteration_bounds = array<i64: 2, 2>, scalar_prefetch = 0 : i64, scratch_operands = 4 : i64, tpu.core_type = #tpu.core_type<tc>, window_params = [{transform_indices = @transform_0, window_bounds = array<i64: 256, 36>}, {pipeline_mode = #tpu.pipeline_mode<synchronous>, transform_indices = @transform_1, window_bounds = array<i64: 36, 128>}, {pipeline_mode = #tpu.pipeline_mode<synchronous>, transform_indices = @transform_2, window_bounds = array<i64: 1, 128>}, {pipeline_mode = #tpu.pipeline_mode<synchronous>, transform_indices = @transform_3, window_bounds = array<i64: 1, 128>}, {transform_indices = @transform_4, window_bounds = array<i64: 256, 128>}]} {
    %c0 = arith.constant 0 : index
    %c0_0 = arith.constant 0 : index
    %0 = vector.load %arg2[%c0, %c0_0] : memref<256x36xf32, #tpu.memory_space<vmem>>, vector<256x36xf32>
    %c0_1 = arith.constant 0 : index
    %c0_2 = arith.constant 0 : index
    %1 = vector.load %arg3[%c0_1, %c0_2] : memref<36x128xf32, #tpu.memory_space<vmem>>, vector<36x128xf32>
    %cst = arith.constant dense<0.000000e+00> : vector<256x128xf32>
    %2 = tpu.matmul %0, %1, %cst {dimension_numbers = #tpu.dot_dimension_numbers<[1], [0], [0], [1], [0, 0, 1, 1], [], []>} : vector<256x36xf32>, vector<36x128xf32>, vector<256x128xf32> -> vector<256x128xf32>
    %c0_i32 = arith.constant 0 : i32
    %3 = arith.cmpi eq, %arg0, %c0_i32 : i32
    %c0_i32_3 = arith.constant 0 : i32
    %4 = arith.cmpi eq, %arg1, %c0_i32_3 : i32
    %5 = arith.andi %3, %4 : i1
    %6 = arith.extui %5 : i1 to i32
    %c0_i32_4 = arith.constant 0 : i32
    %7 = arith.cmpi ne, %6, %c0_i32_4 : i32
    scf.if %7 {
      %cst_11 = arith.constant 0.000000e+00 : f32
      %19 = vector.broadcast %cst_11 : f32 to vector<1x128xf32>
      %c0_12 = arith.constant 0 : index
      %c0_13 = arith.constant 0 : index
      %20 = vector.load %arg7[%c0_12, %c0_13] : memref<1x128xf32, #tpu.memory_space<vmem>>, vector<1x128xf32>
      tpu.vector_store %arg7[%c0_12, %c0_13], %19 {strides = array<i32>} : memref<1x128xf32, #tpu.memory_space<vmem>>, vector<1x128xf32>,
      %cst_14 = arith.constant 0.000000e+00 : f32
      %21 = vector.broadcast %cst_14 : f32 to vector<1x128xf32>
      %c0_15 = arith.constant 0 : index
      %c0_16 = arith.constant 0 : index
      %22 = vector.load %arg8[%c0_15, %c0_16] : memref<1x128xf32, #tpu.memory_space<vmem>>, vector<1x128xf32>
      tpu.vector_store %arg8[%c0_15, %c0_16], %21 {strides = array<i32>} : memref<1x128xf32, #tpu.memory_space<vmem>>, vector<1x128xf32>,
    } else {
    }
    %c0_i32_5 = arith.constant 0 : i32
    %8 = arith.cmpi eq, %arg0, %c0_i32_5 : i32
    %9 = arith.extui %8 : i1 to i32
    %c0_i32_6 = arith.constant 0 : i32
    %10 = arith.cmpi ne, %9, %c0_i32_6 : i32
    scf.if %10 {
      %c0_11 = arith.constant 0 : index
      %c0_12 = arith.constant 0 : index
      %19 = vector.load %arg7[%c0_11, %c0_12] : memref<1x128xf32, #tpu.memory_space<vmem>>, vector<1x128xf32>
      %cst_13 = arith.constant dense<0.000000e+00> : vector<128xf32>
      %20 = vector.multi_reduction <add>, %2, %cst_13 [0] : vector<256x128xf32> to vector<128xf32>
      %21 = vector.shape_cast %20 : vector<128xf32> to vector<1x128xf32>
      %22 = arith.addf %19, %21 : vector<1x128xf32>
      %c0_14 = arith.constant 0 : index
      %c0_15 = arith.constant 0 : index
      %23 = vector.load %arg7[%c0_14, %c0_15] : memref<1x128xf32, #tpu.memory_space<vmem>>, vector<1x128xf32>
      tpu.vector_store %arg7[%c0_14, %c0_15], %22 {strides = array<i32>} : memref<1x128xf32, #tpu.memory_space<vmem>>, vector<1x128xf32>,
      %c0_16 = arith.constant 0 : index
      %c0_17 = arith.constant 0 : index
      %24 = vector.load %arg8[%c0_16, %c0_17] : memref<1x128xf32, #tpu.memory_space<vmem>>, vector<1x128xf32>
      %25 = arith.mulf %2, %2 : vector<256x128xf32>
      %cst_18 = arith.constant dense<0.000000e+00> : vector<128xf32>
      %26 = vector.multi_reduction <add>, %25, %cst_18 [0] : vector<256x128xf32> to vector<128xf32>
      %27 = vector.shape_cast %26 : vector<128xf32> to vector<1x128xf32>
      %28 = arith.addf %24, %27 : vector<1x128xf32>
      %c0_19 = arith.constant 0 : index
      %c0_20 = arith.constant 0 : index
      %29 = vector.load %arg8[%c0_19, %c0_20] : memref<1x128xf32, #tpu.memory_space<vmem>>, vector<1x128xf32>
      tpu.vector_store %arg8[%c0_19, %c0_20], %28 {strides = array<i32>} : memref<1x128xf32, #tpu.memory_space<vmem>>, vector<1x128xf32>,
    } else {
    }
    %c1_i32 = arith.constant 1 : i32
    %11 = arith.cmpi eq, %arg0, %c1_i32 : i32
    %c0_i32_7 = arith.constant 0 : i32
    %12 = arith.cmpi eq, %arg1, %c0_i32_7 : i32
    %13 = arith.andi %11, %12 : i1
    %14 = arith.extui %13 : i1 to i32
    %c0_i32_8 = arith.constant 0 : i32
    %15 = arith.cmpi ne, %14, %c0_i32_8 : i32
    scf.if %15 {
      %c0_11 = arith.constant 0 : index
      %c0_12 = arith.constant 0 : index
      %19 = vector.load %arg7[%c0_11, %c0_12] : memref<1x128xf32, #tpu.memory_space<vmem>>, vector<1x128xf32>
      %cst_13 = arith.constant 0.001953125 : f32
      %20 = vector.broadcast %cst_13 : f32 to vector<1x128xf32>
      %21 = arith.mulf %19, %20 : vector<1x128xf32>
      %c0_14 = arith.constant 0 : index
      %c0_15 = arith.constant 0 : index
      %22 = vector.load %arg8[%c0_14, %c0_15] : memref<1x128xf32, #tpu.memory_space<vmem>>, vector<1x128xf32>
      %cst_16 = arith.constant 0.001953125 : f32
      %23 = vector.broadcast %cst_16 : f32 to vector<1x128xf32>
      %24 = arith.mulf %22, %23 : vector<1x128xf32>
      %25 = arith.mulf %21, %21 : vector<1x128xf32>
      %26 = arith.subf %24, %25 : vector<1x128xf32>
      %cst_17 = arith.constant 0.000000e+00 : f32
      %27 = vector.broadcast %cst_17 : f32 to vector<1x128xf32>
      %28 = arith.maximumf %26, %27 : vector<1x128xf32>
      %c0_18 = arith.constant 0 : index
      %c0_19 = arith.constant 0 : index
      %29 = vector.load %arg4[%c0_18, %c0_19] : memref<1x128xf32, #tpu.memory_space<vmem>>, vector<1x128xf32>
      %cst_20 = arith.constant 9.99999974E-6 : f32
      %30 = vector.broadcast %cst_20 : f32 to vector<1x128xf32>
      %31 = arith.addf %28, %30 : vector<1x128xf32>
      %32 = math.rsqrt %31 : vector<1x128xf32>
      %33 = arith.mulf %29, %32 : vector<1x128xf32>
      %c0_21 = arith.constant 0 : index
      %c0_22 = arith.constant 0 : index
      %34 = vector.load %arg9[%c0_21, %c0_22] : memref<1x128xf32, #tpu.memory_space<vmem>>, vector<1x128xf32>
      tpu.vector_store %arg9[%c0_21, %c0_22], %33 {strides = array<i32>} : memref<1x128xf32, #tpu.memory_space<vmem>>, vector<1x128xf32>,
      %c0_23 = arith.constant 0 : index
      %c0_24 = arith.constant 0 : index
      %35 = vector.load %arg5[%c0_23, %c0_24] : memref<1x128xf32, #tpu.memory_space<vmem>>, vector<1x128xf32>
      %36 = arith.mulf %21, %33 : vector<1x128xf32>
      %37 = arith.subf %35, %36 : vector<1x128xf32>
      %c0_25 = arith.constant 0 : index
      %c0_26 = arith.constant 0 : index
      %38 = vector.load %arg10[%c0_25, %c0_26] : memref<1x128xf32, #tpu.memory_space<vmem>>, vector<1x128xf32>
      tpu.vector_store %arg10[%c0_25, %c0_26], %37 {strides = array<i32>} : memref<1x128xf32, #tpu.memory_space<vmem>>, vector<1x128xf32>,
    } else {
    }
    %c1_i32_9 = arith.constant 1 : i32
    %16 = arith.cmpi eq, %arg0, %c1_i32_9 : i32
    %17 = arith.extui %16 : i1 to i32
    %c0_i32_10 = arith.constant 0 : i32
    %18 = arith.cmpi ne, %17, %c0_i32_10 : i32
    scf.if %18 {
      %c0_11 = arith.constant 0 : index
      %c0_12 = arith.constant 0 : index
      %19 = vector.load %arg9[%c0_11, %c0_12] : memref<1x128xf32, #tpu.memory_space<vmem>>, vector<1x128xf32>
      %20 = vector.broadcast %19 : vector<1x128xf32> to vector<256x128xf32>
      %21 = arith.mulf %2, %20 : vector<256x128xf32>
      %c0_13 = arith.constant 0 : index
      %c0_14 = arith.constant 0 : index
      %22 = vector.load %arg10[%c0_13, %c0_14] : memref<1x128xf32, #tpu.memory_space<vmem>>, vector<1x128xf32>
      %23 = vector.broadcast %22 : vector<1x128xf32> to vector<256x128xf32>
      %24 = arith.addf %21, %23 : vector<256x128xf32>
      %cst_15 = arith.constant 0.000000e+00 : f32
      %25 = vector.broadcast %cst_15 : f32 to vector<256x128xf32>
      %26 = arith.maximumf %24, %25 : vector<256x128xf32>
      %c0_16 = arith.constant 0 : index
      %c0_17 = arith.constant 0 : index
      %27 = vector.load %arg6[%c0_16, %c0_17] : memref<256x128xf32, #tpu.memory_space<vmem>>, vector<256x128xf32>
      tpu.vector_store %arg6[%c0_16, %c0_17], %26 {strides = array<i32>} : memref<256x128xf32, #tpu.memory_space<vmem>>, vector<256x128xf32>,
    } else {
    }
    return
  }
  func.func @transform_0(%arg0: i32, %arg1: i32) -> (i32, i32) {
    %c0_i32 = arith.constant 0 : i32
    %c0_i32_0 = arith.constant 0 : i32
    return %arg1, %c0_i32 : i32, i32
  }
  func.func @transform_1(%arg0: i32, %arg1: i32) -> (i32, i32) {
    %c0_i32 = arith.constant 0 : i32
    %c0_i32_0 = arith.constant 0 : i32
    %c0_i32_1 = arith.constant 0 : i32
    return %c0_i32, %c0_i32_0 : i32, i32
  }
  func.func @transform_2(%arg0: i32, %arg1: i32) -> (i32, i32) {
    %c0_i32 = arith.constant 0 : i32
    %c0_i32_0 = arith.constant 0 : i32
    %c0_i32_1 = arith.constant 0 : i32
    return %c0_i32, %c0_i32_0 : i32, i32
  }
  func.func @transform_3(%arg0: i32, %arg1: i32) -> (i32, i32) {
    %c0_i32 = arith.constant 0 : i32
    %c0_i32_0 = arith.constant 0 : i32
    %c0_i32_1 = arith.constant 0 : i32
    return %c0_i32, %c0_i32_0 : i32, i32
  }
  func.func @transform_4(%arg0: i32, %arg1: i32) -> (i32, i32) {
    %0 = arith.muli %arg0, %arg1 : i32
    %c0_i32 = arith.constant 0 : i32
    %c0_i32_0 = arith.constant 0 : i32
    return %0, %c0_i32 : i32, i32
  }
}

</mosaic_0001>

<llo_original>
// kernel: tpu_custom_call.1
$region0: #{tpu_custom_call.1}
  #allocation0 [shape = 'u32[]', space=smem, size = 0x4, offset = 0x4, fixed_abs, tag = 'smem constant byte address 0x4 - core index']
  #allocation1 [shape = 'u32[144,128]{1,0:T(1,128)}', space=vmem, size = 0x12000, scoped, tag = 'internal scratch']
  #allocation2 [shape = 'f32[1,128]{1,0:T(1,128)}', space=vmem, size = 0x200, scoped, tag = 'scratch operand']
  #allocation3 [shape = 'f32[1,128]{1,0:T(1,128)}', space=vmem, size = 0x200, scoped, tag = 'scratch operand']
  #allocation4 [shape = 'f32[1,128]{1,0:T(1,128)}', space=vmem, size = 0x200, scoped, tag = 'scratch operand']
  #allocation5 [shape = 'f32[1,128]{1,0:T(1,128)}', space=vmem, size = 0x200, scoped, tag = 'scratch operand']
  %s0 = inlined_call_operand.vmem [shape: f32[512,36], index: 0, kind: input, shape index: {}]
  %s1 = inlined_call_operand.vmem [shape: f32[36,128], index: 1, kind: input, shape index: {}]
  %s2 = inlined_call_operand.vmem [shape: f32[1,128], index: 2, kind: input, shape index: {}]
  %s3 = inlined_call_operand.vmem [shape: f32[1,128], index: 3, kind: input, shape index: {}]
  %s4 = inlined_call_operand.hbm [shape: f32[512,128], index: 4, kind: output, shape index: {}]
  %s5 = sld [smem:[#allocation0]]
  $region65: #{tpu_custom_call.1} parent=0
    _
  %s7 = ssub.s32 1, %s5
  %s8 = scalar_select 0, %s7, %s5
  $region1: #{tpu_custom_call.1} parent=0
    #allocation6 [shape = 'u8[262144]{0}', space=vmem, size = 0x40000, scoped, tag = 'output window, operand 0']
    #allocation7 [shape = 's32[2]{0}', space=sflag, size = 0x8, scoped, tag = 'scoped memory for tpu_custom_call.1']
    %9 = vsyncpa [#allocation7], 0
    %s10 = scalar_lea.sflag [#allocation7], 1
    %11 = vsyncpa %s10, 0
    loop: start=0, step=1, limit=6
    $region2: #{tpu_custom_call.1} parent=1 // loop_pre_header
      _
    $region3: #{tpu_custom_call.1} parent=1 // loop_header
      %s13 = sphi 0, %s17
      %p14 = scmp.ge.s32.totalorder %s13, 6
      %s20 = sphi 0, %s32
      %s21 = sphi 0, %s28
      %s22 = sphi 0, %s20
      %s23 = sphi 0, %s21
      %s24 = sphi 0, %s22
      %s25 = sphi 0, %s23
      %s35 = sphi 0, %s37
      %s38 = sphi 0, %s35
      %s39 = sphi 0, %s38
      %s55 = sphi 0, %s39
      %s59 = sphi 0, %s59
      %s61 = sphi 0, %s59
      %s62 = sphi 0, %s61
      %s76 = sphi 0, %s62
      %s80 = sphi 0, %s80
      %s82 = sphi 0, %s80
      %s83 = sphi 0, %s82
      %s97 = sphi 0, %s83
      %s101 = sphi 0, %s101
      %s103 = sphi 0, %s101
      %s104 = sphi 0, %s103
      %s118 = sphi 0, %s104
      %s126 = sphi 0, %s128
      %s129 = sphi 0, %s126
      %s130 = sphi 0, %s129
      %s146 = sphi 0, %s130
    $region4: #{tpu_custom_call.1} parent=1 // loop_header_branch
      %16 = sbr.rel (%p14) target = $region8
    $region5: #{tpu_custom_call.1} parent=1 // loop_body
      %s18 = ssub.s32 %s13, 1
      %s19 = ssub.s32 %s13, 2
      %s26 = sadd.s32 1, %s21
      %p27 = scmp.ge.s32.totalorder %s26, 2
      %s28 = scalar_select %p27, 0, %s26
      %s29 = sadd.s32 1, %s20
      %s30 = scalar_select %p27, %s29, %s20
      %p31 = scmp.ge.s32.totalorder %s30, 2
      %s32 = scalar_select %p31, 0, %s30
      %s33 = ssub.s32 %s21, %s28
      %p34 = scmp.eq.s32.totalorder %s33, 0
      %s36 = sadd.s32 %s35, 1
      %s37 = scalar_select %p34, %s35, %s36
      %p40 = pneg %p34
      %p41 = scmp.eq.s32.totalorder %s13, 3
      %p42 = por %p40, %p41
      %p43 = scmp.ne.s32.totalorder %s35, %s38
      %p44 = scmp.eq.s32.totalorder %s13, 0
      %p45 = por %p43, %p44
      %p46 = scmp.ne.s32.totalorder %s35, %s38
      %p47 = scmp.eq.s32.totalorder %s18, 3
      %p48 = por %p46, %p47
      %p49 = scmp.ne.s32.totalorder %s38, %s39
      %p50 = scmp.eq.s32.totalorder %s18, 0
      %p51 = por %p49, %p50
      %p52 = scmp.ne.s32.totalorder %s38, %s39
      %p53 = scmp.eq.s32.totalorder %s19, 3
      %p54 = por %p52, %p53
      %p56 = scmp.ne.s32.totalorder %s39, %s55
      %p57 = scmp.eq.s32.totalorder %s19, 0
      %p58 = por %p56, %p57
      %s60 = sadd.s32 %s59, 1
      %p63 = scmp.eq.s32.totalorder %s13, 3
      %p64 = scmp.ne.s32.totalorder %s59, %s61
      %p65 = scmp.eq.s32.totalorder %s13, 0
      %p66 = por %p64, %p65
      %p67 = scmp.ne.s32.totalorder %s59, %s61
      %p68 = scmp.eq.s32.totalorder %s18, 3
      %p69 = por %p67, %p68
      %p70 = scmp.ne.s32.totalorder %s61, %s62
      %p71 = scmp.eq.s32.totalorder %s18, 0
      %p72 = por %p70, %p71
      %p73 = scmp.ne.s32.totalorder %s61, %s62
      %p74 = scmp.eq.s32.totalorder %s19, 3
      %p75 = por %p73, %p74
      %p77 = scmp.ne.s32.totalorder %s62, %s76
      %p78 = scmp.eq.s32.totalorder %s19, 0
      %p79 = por %p77, %p78
      %s81 = sadd.s32 %s80, 1
      %p84 = scmp.eq.s32.totalorder %s13, 3
      %p85 = scmp.ne.s32.totalorder %s80, %s82
      %p86 = scmp.eq.s32.totalorder %s13, 0
      %p87 = por %p85, %p86
      %p88 = scmp.ne.s32.totalorder %s80, %s82
      %p89 = scmp.eq.s32.totalorder %s18, 3
      %p90 = por %p88, %p89
      %p91 = scmp.ne.s32.totalorder %s82, %s83
      %p92 = scmp.eq.s32.totalorder %s18, 0
      %p93 = por %p91, %p92
      %p94 = scmp.ne.s32.totalorder %s82, %s83
      %p95 = scmp.eq.s32.totalorder %s19, 3
      %p96 = por %p94, %p95
      %p98 = scmp.ne.s32.totalorder %s83, %s97
      %p99 = scmp.eq.s32.totalorder %s19, 0
      %p100 = por %p98, %p99
      %s102 = sadd.s32 %s101, 1
      %p105 = scmp.eq.s32.totalorder %s13, 3
      %p106 = scmp.ne.s32.totalorder %s101, %s103
      %p107 = scmp.eq.s32.totalorder %s13, 0
      %p108 = por %p106, %p107
      %p109 = scmp.ne.s32.totalorder %s101, %s103
      %p110 = scmp.eq.s32.totalorder %s18, 3
      %p111 = por %p109, %p110
      %p112 = scmp.ne.s32.totalorder %s103, %s104
      %p113 = scmp.eq.s32.totalorder %s18, 0
      %p114 = por %p112, %p113
      %p115 = scmp.ne.s32.totalorder %s103, %s104
      %p116 = scmp.eq.s32.totalorder %s19, 3
      %p117 = por %p115, %p116
      %p119 = scmp.ne.s32.totalorder %s104, %s118
      %p120 = scmp.eq.s32.totalorder %s19, 0
      %p121 = por %p119, %p120
      %s122 = smul.u32 %s20, %s21
      %s123 = smul.u32 %s32, %s28
      %s124 = ssub.s32 %s122, %s123
      %p125 = scmp.eq.s32.totalorder %s124, 0
      %s127 = sadd.s32 %s126, 1
      %s128 = scalar_select %p125, %s126, %s127
      %p131 = pneg %p125
      %p132 = scmp.eq.s32.totalorder %s13, 3
      %p133 = por %p131, %p132
      %p134 = scmp.ne.s32.totalorder %s126, %s129
      %p135 = scmp.eq.s32.totalorder %s13, 0
      %p136 = por %p134, %p135
      %p137 = scmp.ne.s32.totalorder %s126, %s129
      %p138 = scmp.eq.s32.totalorder %s18, 3
      %p139 = por %p137, %p138
      %p140 = scmp.ne.s32.totalorder %s129, %s130
      %p141 = scmp.eq.s32.totalorder %s18, 0
      %p142 = por %p140, %p141
      %p143 = scmp.ne.s32.totalorder %s129, %s130
      %p144 = scmp.eq.s32.totalorder %s19, 3
      %p145 = por %p143, %p144
      %p147 = scmp.ne.s32.totalorder %s130, %s146
      %p148 = scmp.eq.s32.totalorder %s19, 0
      %p149 = por %p147, %p148
      %p150 = scmp.le.s32.totalorder 1, %s13
      %p151 = scmp.lt.s32.totalorder %s13, 5
      %p152 = pnand %p150, %p151
      %p153 = pneg %p152
      // Predicated region
      $region9: #{tpu_custom_call.1} parent=5 // pred_check
        _
      $region10: #{tpu_custom_call.1} parent=5 // pred_check_branch
        %155 = sbr.rel (%p152) target = $region12
      $region11: #{tpu_custom_call.1} parent=5 // pred_region
        %s156 = ssub.s32 %s13, 1
        // Predicated region
        $region13: #{tpu_custom_call.1} parent=11 // pred_check
          %p157 = pneg %p72
        $region14: #{tpu_custom_call.1} parent=11 // pred_check_branch
          %159 = sbr.rel (%p157) target = $region16
        $region15: #{tpu_custom_call.1} parent=11 // pred_region
          _
        $region16: #{tpu_custom_call.1} parent=11 // pred_fallthru
          _
        // Predicated region
        $region17: #{tpu_custom_call.1} parent=11 // pred_check
          %p160 = pneg %p93
        $region18: #{tpu_custom_call.1} parent=11 // pred_check_branch
          %162 = sbr.rel (%p160) target = $region20
        $region19: #{tpu_custom_call.1} parent=11 // pred_region
          _
        $region20: #{tpu_custom_call.1} parent=11 // pred_fallthru
          _
        // Predicated region
        $region21: #{tpu_custom_call.1} parent=11 // pred_check
          %p163 = pneg %p114
        $region22: #{tpu_custom_call.1} parent=11 // pred_check_branch
          %165 = sbr.rel (%p163) target = $region24
        $region23: #{tpu_custom_call.1} parent=11 // pred_region
          _
        $region24: #{tpu_custom_call.1} parent=11 // pred_fallthru
          _
      $region12: #{tpu_custom_call.1} parent=5 // pred_fallthru
        _
      %p166 = scmp.lt.s32.totalorder %s13, 4
      // Predicated region
      $region25: #{tpu_custom_call.1} parent=5 // pred_check
        %p167 = pneg %p166
      $region26: #{tpu_custom_call.1} parent=5 // pred_check_branch
        %169 = sbr.rel (%p167) target = $region28
      $region27: #{tpu_custom_call.1} parent=5 // pred_region
        // Predicated region
        $region29: #{tpu_custom_call.1} parent=27 // pred_check
          %p170 = pneg %p45
        $region30: #{tpu_custom_call.1} parent=27 // pred_check_branch
          %172 = sbr.rel (%p170) target = $region32
        $region31: #{tpu_custom_call.1} parent=27 // pred_region
          %s173 = smul.u32 32, %s21
          %p174 = scmp.lt.s32.totalorder %s173, 63
          %s175 = scalar_select %p174, %s173, 63
          %s176 = smul.addr %s175, 8
          %s177 = scalar_lea.vmem %s0, %s176
          %s178 = smul.u32 32, %s21
        $region32: #{tpu_custom_call.1} parent=27 // pred_fallthru
          _
      $region28: #{tpu_custom_call.1} parent=5 // pred_fallthru
        _
      %p179 = scmp.le.s32.totalorder 1, %s13
      %p180 = scmp.lt.s32.totalorder %s13, 5
      %p181 = pnand %p179, %p180
      %p182 = pneg %p181
      // Predicated region
      $region33: #{tpu_custom_call.1} parent=5 // pred_check
        _
      $region34: #{tpu_custom_call.1} parent=5 // pred_check_branch
        %184 = sbr.rel (%p181) target = $region36
      $region35: #{tpu_custom_call.1} parent=5 // pred_region
        %s185 = ssub.s32 %s13, 1
        %s186 = smul.u32 32, %s23
        %p187 = scmp.lt.s32.totalorder %s186, 63
        %s188 = scalar_select %p187, %s186, 63
        %s189 = smul.addr %s188, 8
        %s190 = scalar_lea.vmem %s0, %s189
        %p191 = pneg %p51
        %p192 = pneg %p48
        %p193 = pneg %p72
        %p194 = pneg %p69
        %p195 = pneg %p93
        %p196 = pneg %p90
        %p197 = pneg %p114
        %p198 = pneg %p111
        %p199 = pneg %p142
        %p200 = pneg %p139
        %s201 = sand.u32 %s129, 1
        %s202 = scalar_lea.sflag [#allocation7], %s201
        %s203 = sand.u32 %s129, 1
        %s204 = smul.addr %s203, 256
        %s205 = scalar_lea.vmem [#allocation6], %s204
        %s206 = smul.u32 32, %s23
        %p207 = scmp.lt.s32.totalorder %s206, 63
        %s208 = scalar_select %p207, %s206, 63
        %s209 = smul.addr %s208, 8
        %s210 = scalar_lea.vmem %s0, %s209
        %s211 = smul.u32 32, %s23
        %s212 = smul.u32 %s22, %s23
        %s213 = smul.u32 32, %s212
        %v214 = vld [vmem:[%s210] sm:$0xff]
        %v215 = vld [vmem:[%s210 + $0x8] sm:$0xff]
        %v216 = vld [vmem:[%s210 + $0x10] sm:$0xff]
        %v217 = vld [vmem:[%s210 + $0x18] sm:$0xff]
        %v218 = vld [vmem:[%s210 + $0x20] sm:$0xff]
        %v219 = vld [vmem:[%s210 + $0x28] sm:$0xff]
        %v220 = vld [vmem:[%s210 + $0x30] sm:$0xff]
        %v221 = vld [vmem:[%s210 + $0x38] sm:$0xff]
        %v222 = vld [vmem:[%s210 + $0x40] sm:$0xff]
        %v223 = vld [vmem:[%s210 + $0x48] sm:$0xff]
        %v224 = vld [vmem:[%s210 + $0x50] sm:$0xff]
        %v225 = vld [vmem:[%s210 + $0x58] sm:$0xff]
        %v226 = vld [vmem:[%s210 + $0x60] sm:$0xff]
        %v227 = vld [vmem:[%s210 + $0x68] sm:$0xff]
        %v228 = vld [vmem:[%s210 + $0x70] sm:$0xff]
        %v229 = vld [vmem:[%s210 + $0x78] sm:$0xff]
        %v230 = vld [vmem:[%s210 + $0x80] sm:$0xff]
        %v231 = vld [vmem:[%s210 + $0x88] sm:$0xff]
        %v232 = vld [vmem:[%s210 + $0x90] sm:$0xff]
        %v233 = vld [vmem:[%s210 + $0x98] sm:$0xff]
        %v234 = vld [vmem:[%s210 + $0xa0] sm:$0xff]
        %v235 = vld [vmem:[%s210 + $0xa8] sm:$0xff]
        %v236 = vld [vmem:[%s210 + $0xb0] sm:$0xff]
        %v237 = vld [vmem:[%s210 + $0xb8] sm:$0xff]
        %v238 = vld [vmem:[%s210 + $0xc0] sm:$0xff]
        %v239 = vld [vmem:[%s210 + $0xc8] sm:$0xff]
        %v240 = vld [vmem:[%s210 + $0xd0] sm:$0xff]
        %v241 = vld [vmem:[%s210 + $0xd8] sm:$0xff]
        %v242 = vld [vmem:[%s210 + $0xe0] sm:$0xff]
        %v243 = vld [vmem:[%s210 + $0xe8] sm:$0xff]
        %v244 = vld [vmem:[%s210 + $0xf0] sm:$0xff]
        %v245 = vld [vmem:[%s210 + $0xf8] sm:$0xff]
        %v246 = vld [vmem:[%s1] sm:$0xff]
        %v247 = vld [vmem:[%s1 + $0x8] sm:$0xff]
        %v248 = vld [vmem:[%s1 + $0x10] sm:$0xff]
        %v249 = vld [vmem:[%s1 + $0x18] sm:$0xff]
        %v250 = vld [vmem:[%s1 + $0x20] sm:$0xf]
        %vm251 = vcmask 293888
        %v253 = vsel %vm251, %v214, 0
        %v256 = vsel %vm251, %v215, 0
        %v259 = vsel %vm251, %v216, 0
        %v262 = vsel %vm251, %v217, 0
        %v265 = vsel %vm251, %v218, 0
        %v268 = vsel %vm251, %v219, 0
        %v271 = vsel %vm251, %v220, 0
        %v274 = vsel %vm251, %v221, 0
        %v277 = vsel %vm251, %v222, 0
        %v280 = vsel %vm251, %v223, 0
        %v283 = vsel %vm251, %v224, 0
        %v286 = vsel %vm251, %v225, 0
        %v289 = vsel %vm251, %v226, 0
        %v292 = vsel %vm251, %v227, 0
        %v295 = vsel %vm251, %v228, 0
        %v298 = vsel %vm251, %v229, 0
        %v301 = vsel %vm251, %v230, 0
        %v304 = vsel %vm251, %v231, 0
        %v307 = vsel %vm251, %v232, 0
        %v310 = vsel %vm251, %v233, 0
        %v313 = vsel %vm251, %v234, 0
        %v316 = vsel %vm251, %v235, 0
        %v319 = vsel %vm251, %v236, 0
        %v322 = vsel %vm251, %v237, 0
        %v325 = vsel %vm251, %v238, 0
        %v328 = vsel %vm251, %v239, 0
        %v331 = vsel %vm251, %v240, 0
        %v334 = vsel %vm251, %v241, 0
        %v337 = vsel %vm251, %v242, 0
        %v340 = vsel %vm251, %v243, 0
        %v343 = vsel %vm251, %v244, 0
        %v346 = vsel %vm251, %v245, 0
        %vm348 = vcmask 1043456
        %v350 = vsel %vm348, %v250, 0
        %352 = vmatprep.subr.mxu0 0.0
        %353 = vmatpush1.msra.mxu0 %v246
        %354 = vmatprep.subr.mxu0 0.0
        %355 = vmatpush1.msra.mxu0 %v247
        %356 = vmatprep.subr.mxu0 0.0
        %357 = vmatpush1.msra.mxu0 %v248
        %358 = vmatprep.subr.mxu0 0.0
        %359 = vmatpush1.msra.mxu0 %v249
        %360 = vmatprep.subr.mxu0 0.0
        %361 = vmatpush1.msra.mxu0 %v350
        %362 = vmatprep.subr.mxu0 0.0
        %363 = vmatpush1.msra.mxu0 0.0
        %364 = vmatprep.subr.mxu0 0.0
        %365 = vmatpush1.msra.mxu0 0.0
        %366 = vmatprep.subr.mxu0 0.0
        %367 = vmatpush1.msra.mxu0 0.0
        %368 = vmatprep.subr.mxu0 0.0
        %369 = vmatpush1.msra.mxu0 0.0
        %370 = vmatprep.subr.mxu0 0.0
        %371 = vmatpush1.msra.mxu0 0.0
        %372 = vmatprep.subr.mxu0 0.0
        %373 = vmatpush1.msra.mxu0 0.0
        %374 = vmatprep.subr.mxu0 0.0
        %375 = vmatpush1.msra.mxu0 0.0
        %376 = vmatprep.subr.mxu0 0.0
        %377 = vmatpush1.msra.mxu0 0.0
        %378 = vmatprep.subr.mxu0 0.0
        %379 = vmatpush1.msra.mxu0 0.0
        %380 = vmatprep.subr.mxu0 0.0
        %381 = vmatpush1.msra.mxu0 0.0
        %382 = vmatprep.subr.mxu0 0.0
        %383 = vmatpush1.msra.mxu0 0.0
        %384 = vmatprep.subr.mxu0 0.0
        %385 = vmatpush1.msra.mxu0 0.0
        %386 = vmatprep.subr.mxu0 0.0
        %387 = vmatpush1.msra.mxu0 0.0
        %388 = vmatprep.subr.mxu0 0.0
        %389 = vmatpush1.msra.mxu0 0.0
        %390 = vmatprep.subr.mxu0 0.0
        %391 = vmatpush1.msra.mxu0 0.0
        %392 = vmatprep.subr.mxu0 0.0
        %393 = vmatpush1.msra.mxu0 0.0
        %394 = vmatprep.subr.mxu0 0.0
        %395 = vmatpush1.msra.mxu0 0.0
        %396 = vmatprep.subr.mxu0 0.0
        %397 = vmatpush1.msra.mxu0 0.0
        %398 = vmatprep.subr.mxu0 0.0
        %399 = vmatpush1.msra.mxu0 0.0
        %400 = vmatprep.subr.mxu0 0.0
        %401 = vmatpush1.msra.mxu0 0.0
        %402 = vmatprep.subr.mxu0 0.0
        %403 = vmatpush1.msra.mxu0 0.0
        %404 = vmatprep.subr.mxu0 0.0
        %405 = vmatpush1.msra.mxu0 0.0
        %406 = vmatprep.subr.mxu0 0.0
        %407 = vmatpush1.msra.mxu0 0.0
        %408 = vmatprep.subr.mxu0 0.0
        %409 = vmatpush1.msra.mxu0 0.0
        %410 = vmatprep.subr.mxu0 0.0
        %411 = vmatpush1.msra.mxu0 0.0
        %412 = vmatprep.subr.mxu0 0.0
        %413 = vmatpush1.msra.mxu0 0.0
        %414 = vmatprep.subr.mxu0 0.0
        %415 = vmatpush1.msra.mxu0 0.0
        %416 = vmatprep.mubr.f32.mxu0 0.0
        %417 = vmatmul.mubr.f32.gmra.mrb[0].mxu0 %v253
        %v418 = vpop.f32.mrb[0].mxu0
        %v419 = vadd.f32 0.0, %v418
        %v420 = vpop.f32.mrb[0].mxu0
        %421 = vmatprep.mubr.f32.mxu0 0.0
        %422 = vmatmul.mubr.f32.gmra.mrb[0].mxu0 %v256
        %v423 = vpop.f32.mrb[0].mxu0
        %v424 = vadd.f32 0.0, %v423
        %v425 = vpop.f32.mrb[0].mxu0
        %426 = vmatprep.mubr.f32.mxu0 0.0
        %427 = vmatmul.mubr.f32.gmra.mrb[0].mxu0 %v259
        %v428 = vpop.f32.mrb[0].mxu0
        %v429 = vadd.f32 0.0, %v428
        %v430 = vpop.f32.mrb[0].mxu0
        %431 = vmatprep.mubr.f32.mxu0 0.0
        %432 = vmatmul.mubr.f32.gmra.mrb[0].mxu0 %v262
        %v433 = vpop.f32.mrb[0].mxu0
        %v434 = vadd.f32 0.0, %v433
        %v435 = vpop.f32.mrb[0].mxu0
        %436 = vmatprep.mubr.f32.mxu0 0.0
        %437 = vmatmul.mubr.f32.gmra.mrb[0].mxu0 %v265
        %v438 = vpop.f32.mrb[0].mxu0
        %v439 = vadd.f32 0.0, %v438
        %v440 = vpop.f32.mrb[0].mxu0
        %441 = vmatprep.mubr.f32.mxu0 0.0
        %442 = vmatmul.mubr.f32.gmra.mrb[0].mxu0 %v268
        %v443 = vpop.f32.mrb[0].mxu0
        %v444 = vadd.f32 0.0, %v443
        %v445 = vpop.f32.mrb[0].mxu0
        %446 = vmatprep.mubr.f32.mxu0 0.0
        %447 = vmatmul.mubr.f32.gmra.mrb[0].mxu0 %v271
        %v448 = vpop.f32.mrb[0].mxu0
        %v449 = vadd.f32 0.0, %v448
        %v450 = vpop.f32.mrb[0].mxu0
        %451 = vmatprep.mubr.f32.mxu0 0.0
        %452 = vmatmul.mubr.f32.gmra.mrb[0].mxu0 %v274
        %v453 = vpop.f32.mrb[0].mxu0
        %v454 = vadd.f32 0.0, %v453
        %v455 = vpop.f32.mrb[0].mxu0
        %456 = vmatprep.mubr.f32.mxu0 0.0
        %457 = vmatmul.mubr.f32.gmra.mrb[0].mxu0 %v277
        %v458 = vpop.f32.mrb[0].mxu0
        %v459 = vadd.f32 0.0, %v458
        %v460 = vpop.f32.mrb[0].mxu0
        %461 = vmatprep.mubr.f32.mxu0 0.0
        %462 = vmatmul.mubr.f32.gmra.mrb[0].mxu0 %v280
        %v463 = vpop.f32.mrb[0].mxu0
        %v464 = vadd.f32 0.0, %v463
        %v465 = vpop.f32.mrb[0].mxu0
        %466 = vmatprep.mubr.f32.mxu0 0.0
        %467 = vmatmul.mubr.f32.gmra.mrb[0].mxu0 %v283
        %v468 = vpop.f32.mrb[0].mxu0
        %v469 = vadd.f32 0.0, %v468
        %v470 = vpop.f32.mrb[0].mxu0
        %471 = vmatprep.mubr.f32.mxu0 0.0
        %472 = vmatmul.mubr.f32.gmra.mrb[0].mxu0 %v286
        %v473 = vpop.f32.mrb[0].mxu0
        %v474 = vadd.f32 0.0, %v473
        %v475 = vpop.f32.mrb[0].mxu0
        %476 = vmatprep.mubr.f32.mxu0 0.0
        %477 = vmatmul.mubr.f32.gmra.mrb[0].mxu0 %v289
        %v478 = vpop.f32.mrb[0].mxu0
        %v479 = vadd.f32 0.0, %v478
        %v480 = vpop.f32.mrb[0].mxu0
        %481 = vmatprep.mubr.f32.mxu0 0.0
        %482 = vmatmul.mubr.f32.gmra.mrb[0].mxu0 %v292
        %v483 = vpop.f32.mrb[0].mxu0
        %v484 = vadd.f32 0.0, %v483
        %v485 = vpop.f32.mrb[0].mxu0
        %486 = vmatprep.mubr.f32.mxu0 0.0
        %487 = vmatmul.mubr.f32.gmra.mrb[0].mxu0 %v295
        %v488 = vpop.f32.mrb[0].mxu0
        %v489 = vadd.f32 0.0, %v488
        %v490 = vpop.f32.mrb[0].mxu0
        %491 = vmatprep.mubr.f32.mxu0 0.0
        %492 = vmatmul.mubr.f32.gmra.mrb[0].mxu0 %v298
        %v493 = vpop.f32.mrb[0].mxu0
        %v494 = vadd.f32 0.0, %v493
        %v495 = vpop.f32.mrb[0].mxu0
        %496 = vmatprep.mubr.f32.mxu0 0.0
        %497 = vmatmul.mubr.f32.gmra.mrb[0].mxu0 %v301
        %v498 = vpop.f32.mrb[0].mxu0
        %v499 = vadd.f32 0.0, %v498
        %v500 = vpop.f32.mrb[0].mxu0
        %501 = vmatprep.mubr.f32.mxu0 0.0
        %502 = vmatmul.mubr.f32.gmra.mrb[0].mxu0 %v304
        %v503 = vpop.f32.mrb[0].mxu0
        %v504 = vadd.f32 0.0, %v503
        %v505 = vpop.f32.mrb[0].mxu0
        %506 = vmatprep.mubr.f32.mxu0 0.0
        %507 = vmatmul.mubr.f32.gmra.mrb[0].mxu0 %v307
        %v508 = vpop.f32.mrb[0].mxu0
        %v509 = vadd.f32 0.0, %v508
        %v510 = vpop.f32.mrb[0].mxu0
        %511 = vmatprep.mubr.f32.mxu0 0.0
        %512 = vmatmul.mubr.f32.gmra.mrb[0].mxu0 %v310
        %v513 = vpop.f32.mrb[0].mxu0
        %v514 = vadd.f32 0.0, %v513
        %v515 = vpop.f32.mrb[0].mxu0
        %516 = vmatprep.mubr.f32.mxu0 0.0
        %517 = vmatmul.mubr.f32.gmra.mrb[0].mxu0 %v313
        %v518 = vpop.f32.mrb[0].mxu0
        %v519 = vadd.f32 0.0, %v518
        %v520 = vpop.f32.mrb[0].mxu0
        %521 = vmatprep.mubr.f32.mxu0 0.0
        %522 = vmatmul.mubr.f32.gmra.mrb[0].mxu0 %v316
        %v523 = vpop.f32.mrb[0].mxu0
        %v524 = vadd.f32 0.0, %v523
        %v525 = vpop.f32.mrb[0].mxu0
        %526 = vmatprep.mubr.f32.mxu0 0.0
        %527 = vmatmul.mubr.f32.gmra.mrb[0].mxu0 %v319
        %v528 = vpop.f32.mrb[0].mxu0
        %v529 = vadd.f32 0.0, %v528
        %v530 = vpop.f32.mrb[0].mxu0
        %531 = vmatprep.mubr.f32.mxu0 0.0
        %532 = vmatmul.mubr.f32.gmra.mrb[0].mxu0 %v322
        %v533 = vpop.f32.mrb[0].mxu0
        %v534 = vadd.f32 0.0, %v533
        %v535 = vpop.f32.mrb[0].mxu0
        %536 = vmatprep.mubr.f32.mxu0 0.0
        %537 = vmatmul.mubr.f32.gmra.mrb[0].mxu0 %v325
        %v538 = vpop.f32.mrb[0].mxu0
        %v539 = vadd.f32 0.0, %v538
        %v540 = vpop.f32.mrb[0].mxu0
        %541 = vmatprep.mubr.f32.mxu0 0.0
        %542 = vmatmul.mubr.f32.gmra.mrb[0].mxu0 %v328
        %v543 = vpop.f32.mrb[0].mxu0
        %v544 = vadd.f32 0.0, %v543
        %v545 = vpop.f32.mrb[0].mxu0
        %546 = vmatprep.mubr.f32.mxu0 0.0
        %547 = vmatmul.mubr.f32.gmra.mrb[0].mxu0 %v331
        %v548 = vpop.f32.mrb[0].mxu0
        %v549 = vadd.f32 0.0, %v548
        %v550 = vpop.f32.mrb[0].mxu0
        %551 = vmatprep.mubr.f32.mxu0 0.0
        %552 = vmatmul.mubr.f32.gmra.mrb[0].mxu0 %v334
        %v553 = vpop.f32.mrb[0].mxu0
        %v554 = vadd.f32 0.0, %v553
        %v555 = vpop.f32.mrb[0].mxu0
        %556 = vmatprep.mubr.f32.mxu0 0.0
        %557 = vmatmul.mubr.f32.gmra.mrb[0].mxu0 %v337
        %v558 = vpop.f32.mrb[0].mxu0
        %v559 = vadd.f32 0.0, %v558
        %v560 = vpop.f32.mrb[0].mxu0
        %561 = vmatprep.mubr.f32.mxu0 0.0
        %562 = vmatmul.mubr.f32.gmra.mrb[0].mxu0 %v340
        %v563 = vpop.f32.mrb[0].mxu0
        %v564 = vadd.f32 0.0, %v563
        %v565 = vpop.f32.mrb[0].mxu0
        %566 = vmatprep.mubr.f32.mxu0 0.0
        %567 = vmatmul.mubr.f32.gmra.mrb[0].mxu0 %v343
        %v568 = vpop.f32.mrb[0].mxu0
        %v569 = vadd.f32 0.0, %v568
        %v570 = vpop.f32.mrb[0].mxu0
        %571 = vmatprep.mubr.f32.mxu0 0.0
        %572 = vmatmul.mubr.f32.gmra.mrb[0].mxu0 %v346
        %v573 = vpop.f32.mrb[0].mxu0
        %v574 = vadd.f32 0.0, %v573
        %v575 = vpop.f32.mrb[0].mxu0
        %576 = vdwg.mxu0
        %p577 = scmp.eq.s32.totalorder %s22, 0
        %p578 = scmp.eq.s32.totalorder %s23, 0
        %p579 = pnand %p577, %p578
        %p580 = pneg %p579
        // Predicated region
        $region37: #{tpu_custom_call.1} parent=35 // pred_check
          _
        $region38: #{tpu_custom_call.1} parent=35 // pred_check_branch
          %582 = sbr.rel (%p579) target = $region40
        $region39: #{tpu_custom_call.1} parent=35 // pred_region
          %583 = vst [vmem:[#allocation2] sm:$0x1] 0.0
          %584 = vst [vmem:[#allocation3] sm:$0x1] 0.0
        $region40: #{tpu_custom_call.1} parent=35 // pred_fallthru
          _
        // Predicated region
        $region41: #{tpu_custom_call.1} parent=35 // pred_check
          %p585 = pneg %p577
        $region42: #{tpu_custom_call.1} parent=35 // pred_check_branch
          %587 = sbr.rel (%p585) target = $region44
        $region43: #{tpu_custom_call.1} parent=35 // pred_region
          %v588 = vld [vmem:[#allocation2] sm:$0x1]
          %v589 = vadd.f32 %v419, %v424
          %v590 = vadd.f32 %v589, %v429
          %v591 = vadd.f32 %v590, %v434
          %v592 = vadd.f32 %v591, %v439
          %v593 = vadd.f32 %v592, %v444
          %v594 = vadd.f32 %v593, %v449
          %v595 = vadd.f32 %v594, %v454
          %v596 = vadd.f32 %v595, %v459
          %v597 = vadd.f32 %v596, %v464
          %v598 = vadd.f32 %v597, %v469
          %v599 = vadd.f32 %v598, %v474
          %v600 = vadd.f32 %v599, %v479
          %v601 = vadd.f32 %v600, %v484
          %v602 = vadd.f32 %v601, %v489
          %v603 = vadd.f32 %v602, %v494
          %v604 = vadd.f32 %v603, %v499
          %v605 = vadd.f32 %v604, %v504
          %v606 = vadd.f32 %v605, %v509
          %v607 = vadd.f32 %v606, %v514
          %v608 = vadd.f32 %v607, %v519
          %v609 = vadd.f32 %v608, %v524
          %v610 = vadd.f32 %v609, %v529
          %v611 = vadd.f32 %v610, %v534
          %v612 = vadd.f32 %v611, %v539
          %v613 = vadd.f32 %v612, %v544
          %v614 = vadd.f32 %v613, %v549
          %v615 = vadd.f32 %v614, %v554
          %v616 = vadd.f32 %v615, %v559
          %v617 = vadd.f32 %v616, %v564
          %v618 = vadd.f32 %v617, %v569
          %v619 = vadd.f32 %v618, %v574
          %v620 = vrot.slane %v619, 4
          %v621 = vadd.f32 %v619, %v620
          %v622 = vrot.slane %v621, 2
          %v623 = vadd.f32 %v621, %v622
          %v624 = vrot.slane %v623, 1
          %v625 = vadd.f32 %v623, %v624
          %v626 = vadd.f32 %v588, %v625
          %627 = vst [vmem:[#allocation2] sm:$0x1] %v626
          %v628 = vld [vmem:[#allocation3] sm:$0x1]
          %v629 = vmul.f32 %v419, %v419
          %v630 = vmul.f32 %v424, %v424
          %v631 = vmul.f32 %v429, %v429
          %v632 = vmul.f32 %v434, %v434
          %v633 = vmul.f32 %v439, %v439
          %v634 = vmul.f32 %v444, %v444
          %v635 = vmul.f32 %v449, %v449
          %v636 = vmul.f32 %v454, %v454
          %v637 = vmul.f32 %v459, %v459
          %v638 = vmul.f32 %v464, %v464
          %v639 = vmul.f32 %v469, %v469
          %v640 = vmul.f32 %v474, %v474
          %v641 = vmul.f32 %v479, %v479
          %v642 = vmul.f32 %v484, %v484
          %v643 = vmul.f32 %v489, %v489
          %v644 = vmul.f32 %v494, %v494
          %v645 = vmul.f32 %v499, %v499
          %v646 = vmul.f32 %v504, %v504
          %v647 = vmul.f32 %v509, %v509
          %v648 = vmul.f32 %v514, %v514
          %v649 = vmul.f32 %v519, %v519
          %v650 = vmul.f32 %v524, %v524
          %v651 = vmul.f32 %v529, %v529
          %v652 = vmul.f32 %v534, %v534
          %v653 = vmul.f32 %v539, %v539
          %v654 = vmul.f32 %v544, %v544
          %v655 = vmul.f32 %v549, %v549
          %v656 = vmul.f32 %v554, %v554
          %v657 = vmul.f32 %v559, %v559
          %v658 = vmul.f32 %v564, %v564
          %v659 = vmul.f32 %v569, %v569
          %v660 = vmul.f32 %v574, %v574
          %v661 = vadd.f32 %v629, %v630
          %v662 = vadd.f32 %v661, %v631
          %v663 = vadd.f32 %v662, %v632
          %v664 = vadd.f32 %v663, %v633
          %v665 = vadd.f32 %v664, %v634
          %v666 = vadd.f32 %v665, %v635
          %v667 = vadd.f32 %v666, %v636
          %v668 = vadd.f32 %v667, %v637
          %v669 = vadd.f32 %v668, %v638
          %v670 = vadd.f32 %v669, %v639
          %v671 = vadd.f32 %v670, %v640
          %v672 = vadd.f32 %v671, %v641
          %v673 = vadd.f32 %v672, %v642
          %v674 = vadd.f32 %v673, %v643
          %v675 = vadd.f32 %v674, %v644
          %v676 = vadd.f32 %v675, %v645
          %v677 = vadd.f32 %v676, %v646
          %v678 = vadd.f32 %v677, %v647
          %v679 = vadd.f32 %v678, %v648
          %v680 = vadd.f32 %v679, %v649
          %v681 = vadd.f32 %v680, %v650
          %v682 = vadd.f32 %v681, %v651
          %v683 = vadd.f32 %v682, %v652
          %v684 = vadd.f32 %v683, %v653
          %v685 = vadd.f32 %v684, %v654
          %v686 = vadd.f32 %v685, %v655
          %v687 = vadd.f32 %v686, %v656
          %v688 = vadd.f32 %v687, %v657
          %v689 = vadd.f32 %v688, %v658
          %v690 = vadd.f32 %v689, %v659
          %v691 = vadd.f32 %v690, %v660
          %v692 = vrot.slane %v691, 4
          %v693 = vadd.f32 %v691, %v692
          %v694 = vrot.slane %v693, 2
          %v695 = vadd.f32 %v693, %v694
          %v696 = vrot.slane %v695, 1
          %v697 = vadd.f32 %v695, %v696
          %v698 = vadd.f32 %v628, %v697
          %699 = vst [vmem:[#allocation3] sm:$0x1] %v698
        $region44: #{tpu_custom_call.1} parent=35 // pred_fallthru
          _
        %p700 = scmp.eq.s32.totalorder %s22, 1
        %p701 = pnand %p700, %p578
        %p702 = pneg %p701
        // Predicated region
        $region45: #{tpu_custom_call.1} parent=35 // pred_check
          _
        $region46: #{tpu_custom_call.1} parent=35 // pred_check_branch
          %704 = sbr.rel (%p701) target = $region48
        $region47: #{tpu_custom_call.1} parent=35 // pred_region
          %v705 = vld [vmem:[#allocation2] sm:$0x1]
          %v706 = vmul.f32 %v705, 0.001953125
          %v707 = vld [vmem:[#allocation3] sm:$0x1]
          %v708 = vmul.f32 %v707, 0.001953125
          %v709 = vmul.f32 %v706, %v706
          %v710 = vsub.f32 %v708, %v709
          %v711 = vmax.f32 %v710, 0.0
          %v712 = vld [vmem:[%s2] sm:$0x1]
          %v713 = vadd.f32 %v711, 1e-05
          %v714 = vrsqrt.pop %v713
          %v715 = vmul.f32 %v712, %v714
          %716 = vst [vmem:[#allocation4] sm:$0x1] %v715
          %v717 = vld [vmem:[%s3] sm:$0x1]
          %v718 = vmul.f32 %v706, %v715
          %v719 = vsub.f32 %v717, %v718
          %720 = vst [vmem:[#allocation5] sm:$0x1] %v719
        $region48: #{tpu_custom_call.1} parent=35 // pred_fallthru
          _
        // Predicated region
        $region49: #{tpu_custom_call.1} parent=35 // pred_check
          %p721 = pneg %p700
        $region50: #{tpu_custom_call.1} parent=35 // pred_check_branch
          %723 = sbr.rel (%p721) target = $region52
        $region51: #{tpu_custom_call.1} parent=35 // pred_region
          %v724 = vld [vmem:[#allocation4] sm:$0x1]
          %v726 = vlaneseq
          %v727 = vshrl.u32 %v726, 7
          %v728 = vsub.s32 0, %v727
          %v729 = vrot.slane %v724, %v728
          %v731 = vmul.f32 %v419, %v729
          %v732 = vmul.f32 %v424, %v729
          %v733 = vmul.f32 %v429, %v729
          %v734 = vmul.f32 %v434, %v729
          %v735 = vmul.f32 %v439, %v729
          %v736 = vmul.f32 %v444, %v729
          %v737 = vmul.f32 %v449, %v729
          %v738 = vmul.f32 %v454, %v729
          %v739 = vmul.f32 %v459, %v729
          %v740 = vmul.f32 %v464, %v729
          %v741 = vmul.f32 %v469, %v729
          %v742 = vmul.f32 %v474, %v729
          %v743 = vmul.f32 %v479, %v729
          %v744 = vmul.f32 %v484, %v729
          %v745 = vmul.f32 %v489, %v729
          %v746 = vmul.f32 %v494, %v729
          %v747 = vmul.f32 %v499, %v729
          %v748 = vmul.f32 %v504, %v729
          %v749 = vmul.f32 %v509, %v729
          %v750 = vmul.f32 %v514, %v729
          %v751 = vmul.f32 %v519, %v729
          %v752 = vmul.f32 %v524, %v729
          %v753 = vmul.f32 %v529, %v729
          %v754 = vmul.f32 %v534, %v729
          %v755 = vmul.f32 %v539, %v729
          %v756 = vmul.f32 %v544, %v729
          %v757 = vmul.f32 %v549, %v729
          %v758 = vmul.f32 %v554, %v729
          %v759 = vmul.f32 %v559, %v729
          %v760 = vmul.f32 %v564, %v729
          %v761 = vmul.f32 %v569, %v729
          %v762 = vmul.f32 %v574, %v729
          %v763 = vld [vmem:[#allocation5] sm:$0x1]
          %v765 = vlaneseq
          %v766 = vshrl.u32 %v765, 7
          %v767 = vsub.s32 0, %v766
          %v768 = vrot.slane %v763, %v767
          %v770 = vadd.f32 %v731, %v768
          %v771 = vadd.f32 %v732, %v768
          %v772 = vadd.f32 %v733, %v768
          %v773 = vadd.f32 %v734, %v768
          %v774 = vadd.f32 %v735, %v768
          %v775 = vadd.f32 %v736, %v768
          %v776 = vadd.f32 %v737, %v768
          %v777 = vadd.f32 %v738, %v768
          %v778 = vadd.f32 %v739, %v768
          %v779 = vadd.f32 %v740, %v768
          %v780 = vadd.f32 %v741, %v768
          %v781 = vadd.f32 %v742, %v768
          %v782 = vadd.f32 %v743, %v768
          %v783 = vadd.f32 %v744, %v768
          %v784 = vadd.f32 %v745, %v768
          %v785 = vadd.f32 %v746, %v768
          %v786 = vadd.f32 %v747, %v768
          %v787 = vadd.f32 %v748, %v768
          %v788 = vadd.f32 %v749, %v768
          %v789 = vadd.f32 %v750, %v768
          %v790 = vadd.f32 %v751, %v768
          %v791 = vadd.f32 %v752, %v768
          %v792 = vadd.f32 %v753, %v768
          %v793 = vadd.f32 %v754, %v768
          %v794 = vadd.f32 %v755, %v768
          %v795 = vadd.f32 %v756, %v768
          %v796 = vadd.f32 %v757, %v768
          %v797 = vadd.f32 %v758, %v768
          %v798 = vadd.f32 %v759, %v768
          %v799 = vadd.f32 %v760, %v768
          %v800 = vadd.f32 %v761, %v768
          %v801 = vadd.f32 %v762, %v768
          %v802 = vmax.f32 %v770, 0.0
          %v803 = vmax.f32 %v771, 0.0
          %v804 = vmax.f32 %v772, 0.0
          %v805 = vmax.f32 %v773, 0.0
          %v806 = vmax.f32 %v774, 0.0
          %v807 = vmax.f32 %v775, 0.0
          %v808 = vmax.f32 %v776, 0.0
          %v809 = vmax.f32 %v777, 0.0
          %v810 = vmax.f32 %v778, 0.0
          %v811 = vmax.f32 %v779, 0.0
          %v812 = vmax.f32 %v780, 0.0
          %v813 = vmax.f32 %v781, 0.0
          %v814 = vmax.f32 %v782, 0.0
          %v815 = vmax.f32 %v783, 0.0
          %v816 = vmax.f32 %v784, 0.0
          %v817 = vmax.f32 %v785, 0.0
          %v818 = vmax.f32 %v786, 0.0
          %v819 = vmax.f32 %v787, 0.0
          %v820 = vmax.f32 %v788, 0.0
          %v821 = vmax.f32 %v789, 0.0
          %v822 = vmax.f32 %v790, 0.0
          %v823 = vmax.f32 %v791, 0.0
          %v824 = vmax.f32 %v792, 0.0
          %v825 = vmax.f32 %v793, 0.0
          %v826 = vmax.f32 %v794, 0.0
          %v827 = vmax.f32 %v795, 0.0
          %v828 = vmax.f32 %v796, 0.0
          %v829 = vmax.f32 %v797, 0.0
          %v830 = vmax.f32 %v798, 0.0
          %v831 = vmax.f32 %v799, 0.0
          %v832 = vmax.f32 %v800, 0.0
          %v833 = vmax.f32 %v801, 0.0
          %834 = vst [vmem:[%s205] sm:$0xff] %v802
          %835 = vst [vmem:[%s205 + $0x8] sm:$0xff] %v803
          %836 = vst [vmem:[%s205 + $0x10] sm:$0xff] %v804
          %837 = vst [vmem:[%s205 + $0x18] sm:$0xff] %v805
          %838 = vst [vmem:[%s205 + $0x20] sm:$0xff] %v806
          %839 = vst [vmem:[%s205 + $0x28] sm:$0xff] %v807
          %840 = vst [vmem:[%s205 + $0x30] sm:$0xff] %v808
          %841 = vst [vmem:[%s205 + $0x38] sm:$0xff] %v809
          %842 = vst [vmem:[%s205 + $0x40] sm:$0xff] %v810
          %843 = vst [vmem:[%s205 + $0x48] sm:$0xff] %v811
          %844 = vst [vmem:[%s205 + $0x50] sm:$0xff] %v812
          %845 = vst [vmem:[%s205 + $0x58] sm:$0xff] %v813
          %846 = vst [vmem:[%s205 + $0x60] sm:$0xff] %v814
          %847 = vst [vmem:[%s205 + $0x68] sm:$0xff] %v815
          %848 = vst [vmem:[%s205 + $0x70] sm:$0xff] %v816
          %849 = vst [vmem:[%s205 + $0x78] sm:$0xff] %v817
          %850 = vst [vmem:[%s205 + $0x80] sm:$0xff] %v818
          %851 = vst [vmem:[%s205 + $0x88] sm:$0xff] %v819
          %852 = vst [vmem:[%s205 + $0x90] sm:$0xff] %v820
          %853 = vst [vmem:[%s205 + $0x98] sm:$0xff] %v821
          %854 = vst [vmem:[%s205 + $0xa0] sm:$0xff] %v822
          %855 = vst [vmem:[%s205 + $0xa8] sm:$0xff] %v823
          %856 = vst [vmem:[%s205 + $0xb0] sm:$0xff] %v824
          %857 = vst [vmem:[%s205 + $0xb8] sm:$0xff] %v825
          %858 = vst [vmem:[%s205 + $0xc0] sm:$0xff] %v826
          %859 = vst [vmem:[%s205 + $0xc8] sm:$0xff] %v827
          %860 = vst [vmem:[%s205 + $0xd0] sm:$0xff] %v828
          %861 = vst [vmem:[%s205 + $0xd8] sm:$0xff] %v829
          %862 = vst [vmem:[%s205 + $0xe0] sm:$0xff] %v830
          %863 = vst [vmem:[%s205 + $0xe8] sm:$0xff] %v831
          %864 = vst [vmem:[%s205 + $0xf0] sm:$0xff] %v832
          %865 = vst [vmem:[%s205 + $0xf8] sm:$0xff] %v833
        $region52: #{tpu_custom_call.1} parent=35 // pred_fallthru
          _
        %s866 = sand.u32 %s129, 1
        %s867 = scalar_lea.sflag [#allocation7], %s866
        %s868 = sand.u32 %s129, 1
        %s869 = smul.addr %s868, 256
        %s870 = scalar_lea.vmem [#allocation6], %s869
        // Predicated region
        $region53: #{tpu_custom_call.1} parent=35 // pred_check
          %p871 = pneg %p139
        $region54: #{tpu_custom_call.1} parent=35 // pred_check_branch
          %873 = sbr.rel (%p871) target = $region56
        $region55: #{tpu_custom_call.1} parent=35 // pred_region
          %s874 = smul.u32 %s22, %s23
          %s875 = smul.u32 32, %s874
          %s877 = ssub.s32 4096, 4096
          %878 = vsyncadd %s867, %s877
          %s879 = smul.addr %s875, 128
          %s880 = scalar_lea.hbm %s4, %s879
          %s881 = sshll.u32 %s870, 4
          %s882 = int_to_ptr.vmem [resolvable:$true] %s881
          %887 = dma.vmem_to_hbm [thread:$0]  %s882, 4096, %s880, %s867, 128, 128, 8
        $region56: #{tpu_custom_call.1} parent=35 // pred_fallthru
          _
      $region36: #{tpu_custom_call.1} parent=5 // pred_fallthru
        _
      %p888 = scmp.le.s32.totalorder 2, %s13
      // Predicated region
      $region57: #{tpu_custom_call.1} parent=5 // pred_check
        %p889 = pneg %p888
      $region58: #{tpu_custom_call.1} parent=5 // pred_check_branch
        %891 = sbr.rel (%p889) target = $region60
      $region59: #{tpu_custom_call.1} parent=5 // pred_region
        %s892 = ssub.s32 %s13, 2
        // Predicated region
        $region61: #{tpu_custom_call.1} parent=59 // pred_check
          %p893 = pneg %p145
        $region62: #{tpu_custom_call.1} parent=59 // pred_check_branch
          %895 = sbr.rel (%p893) target = $region64
        $region63: #{tpu_custom_call.1} parent=59 // pred_region
          %s896 = sand.u32 %s130, 1
          %s897 = scalar_lea.sflag [#allocation7], %s896
          %s898 = sand.u32 %s130, 1
          %s899 = smul.addr %s898, 256
          %s900 = scalar_lea.vmem [#allocation6], %s899
          %901 = dma.done %s897, 4096
        $region64: #{tpu_custom_call.1} parent=59 // pred_fallthru
          _
      $region60: #{tpu_custom_call.1} parent=5 // pred_fallthru
        _
    $region6: #{tpu_custom_call.1} parent=1 // loop_footer
      %s17 = sadd.s32 1, %s13
    $region7: #{tpu_custom_call.1} parent=1 // loop_footer_branch
      %12 = sbr.rel target = $region3
    $region8: #{tpu_custom_call.1} parent=1 // loop_exit
      _
    %902 = vsyncpa [#allocation7], 1
    %s903 = scalar_lea.sflag [#allocation7], 1
    %904 = vsyncpa %s903, 1

</llo_original>
